<compile_context>
chip_gen: v7x
topology: tpu7x:2x2x1
jax: 0.10.0
libtpu: 0.0.40
codegen_flags: <defaults>
</compile_context>

<pallas_src>
import functools
import math

import jax
import jax.numpy as jnp
from jax.experimental import pallas as pl
from jax.experimental.pallas import tpu as pltpu

LANES = 128
SUBLANES = 8
TM_MULTI = 512          # row tile when several grid steps are needed
TM_SINGLE_MAX = 2048    # largest single-block tile (1 MiB / input, VMEM-safe on v7x)


def _ufl_kernel(x_ref, y_ref, acc_ref, *, delta, gamma, logit_thresh):
    s = pl.program_id(1)

    @pl.when(s == 0)
    def _():
        acc_ref[...] = jnp.zeros_like(acc_ref)

    x = x_ref[...].astype(jnp.float32)     # logits
    y = y_ref[...].astype(jnp.float32)     # binary labels

    # ---- focal BCE: share exp(-|x|) between sigmoid and the log1p term ----
    e = jnp.exp(-jnp.abs(x))
    log1pe = jnp.log1p(e)
    bce = jnp.maximum(x, 0.0) - x * y + log1pe       # stable BCE-with-logits
    inv = 1.0 / (1.0 + e)
    p = jnp.where(x >= 0.0, inv, e * inv)            # sigmoid(x)

    one_minus_pt = p + y - 2.0 * (p * y)             # = 1 - p_t
    if gamma == 1.0:                                  # (1-p_t)^0 == 1
        focal = delta * bce
    else:
        if gamma == 0.5:
            w = jnp.sqrt(one_minus_pt)               # pow -> single sqrt
        else:
            w = jnp.power(one_minus_pt, 1.0 - gamma)
        focal = delta * w * bce

    # ---- focal Tversky counts (threshold in logit space: no sigmoid dep) ----
    pred_bin = (x > logit_thresh).astype(jnp.float32)
    tp = pred_bin * y
    fp = pred_bin - tp                               # pred_bin * (1 - y)
    fn = y - tp                                      # (1 - pred_bin) * y

    # fold (tm, 128) -> (8, 128) with pure vector adds; lane reduce in wrapper
    tm = x.shape[0]

    def fold(v):
        return v.reshape(tm // SUBLANES, SUBLANES, LANES).sum(axis=0)

    acc_ref[0] = acc_ref[0] + fold(focal)
    acc_ref[1] = acc_ref[1] + fold(tp)
    acc_ref[2] = acc_ref[2] + fold(fp)
    acc_ref[3] = acc_ref[3] + fold(fn)


def symmetric_unified_focal_loss(preds, labels, *, delta=0.6, gamma=0.5,
                                 lambda_=0.5, threshold=0.5, eps=1e-7):
    n_total = preds.size
    n128 = -(-n_total // LANES)
    rows8 = -(-n128 // SUBLANES) * SUBLANES

    if rows8 <= TM_SINGLE_MAX:
        tm, num_cores, steps = rows8, 1, 1
    else:
        tm = TM_MULTI
        num_cores = 2                      # v7x: one "parallel" slice per TensorCore
        total_steps = -(-rows8 // tm)
        steps = -(-total_steps // num_cores)
    rows = num_cores * steps * tm
    n_pad = rows * LANES
    pad_count = n_pad - n_total

    x = preds.reshape(-1)
    y = labels.reshape(-1)
    if pad_count:
        # only when the flattened size isn't tile-aligned
        x = jnp.pad(x, (0, pad_count))
        y = jnp.pad(y, (0, pad_count))
    x = x.reshape(rows, LANES)
    y = y.reshape(rows, LANES)

    logit_thresh = math.log(threshold) - math.log1p(-threshold)

    kernel = functools.partial(_ufl_kernel, delta=float(delta),
                               gamma=float(gamma), logit_thresh=logit_thresh)

    def data_map(c, s):
        return (c * steps + s, 0)

    in_spec = pl.BlockSpec((tm, LANES), data_map)
    out_spec = pl.BlockSpec((4, SUBLANES, LANES), lambda c, s: (c, 0, 0))

    acc = pl.pallas_call(
        kernel,
        out_shape=jax.ShapeDtypeStruct((num_cores * 4, SUBLANES, LANES),
                                       jnp.float32),
        grid_spec=pltpu.PrefetchScalarGridSpec(
            num_scalar_prefetch=0,
            grid=(num_cores, steps),
            in_specs=[in_spec, in_spec],
            out_specs=out_spec,
        ),
        compiler_params=pltpu.CompilerParams(
            dimension_semantics=("parallel", "arbitrary")),
    )(x, y)

    # final lane/sublane reduction + core combine in plain JAX (tiny)
    sums = jnp.sum(acc.reshape(num_cores, 4, SUBLANES * LANES), axis=(0, 2))
    focal_sum, tp, fp, fn = sums[0], sums[1], sums[2], sums[3]

    if pad_count:
        # zero-padded elements: x = 0, y = 0  ->  bce = log 2, 1 - p_t = 0.5
        one = jnp.float32(1.0)
        bce0 = jnp.log1p(one)
        if gamma == 1.0:
            focal0 = delta * bce0
        elif gamma == 0.5:
            focal0 = delta * jnp.sqrt(jnp.float32(0.5)) * bce0
        else:
            focal0 = delta * jnp.power(jnp.float32(0.5), 1.0 - gamma) * bce0
        focal_sum = focal_sum - pad_count * focal0
        if 0.0 > logit_thresh:             # pad logits would classify positive
            fp = fp - jnp.float32(pad_count)

    cross_entropy = focal_sum / n_total
    tversky_score = tp / (tp + delta * fp + (1.0 - delta) * fn + eps)
    tversky = (1.0 - tversky_score) ** gamma
    return lambda_ * cross_entropy + (1.0 - lambda_) * tversky


def _reference(preds, labels, *, delta=0.6, gamma=0.5, lambda_=0.5,
               threshold=0.5, eps=1e-7):
    x = preds.astype(jnp.float32)
    y = labels.astype(jnp.float32)
    p = jax.nn.sigmoid(x)
    p_t = y * p + (1 - y) * (1 - p)
    bce = jnp.maximum(x, 0.0) - x * y + jnp.log1p(jnp.exp(-jnp.abs(x)))
    ce = jnp.mean(delta * (1.0 - p_t) ** (1 - gamma) * bce)
    pb = (p > threshold).astype(jnp.float32)
    tp = jnp.sum(pb * y); fp = jnp.sum(pb * (1 - y)); fn = jnp.sum((1 - pb) * y)
    tv = (1 - tp / (tp + delta * fp + (1 - delta) * fn + eps)) ** gamma
    return lambda_ * ce + (1 - lambda_) * tv


if __name__ == "__main__":
    key = jax.random.PRNGKey(0)
    k1, k2 = jax.random.split(key)
    B, C, H, W = 2, 4, 16, 16
    preds = jax.random.normal(k1, (B, C, H, W), dtype=jnp.float32)      # logits
    labels = jax.random.bernoulli(k2, 0.4, (B, C, H, W)).astype(jnp.float32)

    loss = symmetric_unified_focal_loss(preds, labels)
    loss = jax.block_until_ready(loss)

    ref = _reference(preds, labels)
    assert jnp.allclose(loss, ref, rtol=1e-5, atol=1e-5), (loss, ref)
    print("KERNEL_OK")
</pallas_src>

<mosaic_0001>
module attributes {stable_mosaic.version = 11 : i64} {
  func.func @_ufl_kernel(%arg0: i32, %arg1: i32, %arg2: memref<16x128xf32, #tpu.memory_space<vmem>>, %arg3: memref<16x128xf32, #tpu.memory_space<vmem>>, %arg4: memref<4x8x128xf32, #tpu.memory_space<vmem>>) attributes {dimension_semantics = [#tpu.dimension_semantics<parallel>, #tpu.dimension_semantics<arbitrary>], iteration_bounds = array<i64: 1, 1>, scalar_prefetch = 0 : i64, scratch_operands = 0 : i64, tpu.core_type = #tpu.core_type<tc>, window_params = [{transform_indices = @transform_0, window_bounds = array<i64: 16, 128>}, {transform_indices = @transform_1, window_bounds = array<i64: 16, 128>}, {transform_indices = @transform_2, window_bounds = array<i64: 4, 8, 128>}]} {
    %c0_i32 = arith.constant 0 : i32
    %0 = arith.cmpi eq, %arg1, %c0_i32 : i32
    %1 = arith.extui %0 : i1 to i32
    %c0_i32_0 = arith.constant 0 : i32
    %2 = arith.cmpi ne, %1, %c0_i32_0 : i32
    scf.if %2 {
      %cst_36 = arith.constant 0.000000e+00 : f32
      %71 = vector.broadcast %cst_36 : f32 to vector<4x8x128xf32>
      %c0_37 = arith.constant 0 : index
      %c0_38 = arith.constant 0 : index
      %c0_39 = arith.constant 0 : index
      %72 = vector.load %arg4[%c0_37, %c0_38, %c0_39] : memref<4x8x128xf32, #tpu.memory_space<vmem>>, vector<4x8x128xf32>
      tpu.vector_store %arg4[%c0_37, %c0_38, %c0_39], %71 {strides = array<i32>} : memref<4x8x128xf32, #tpu.memory_space<vmem>>, vector<4x8x128xf32>,
    } else {
    }
    %c0 = arith.constant 0 : index
    %c0_1 = arith.constant 0 : index
    %3 = vector.load %arg2[%c0, %c0_1] : memref<16x128xf32, #tpu.memory_space<vmem>>, vector<16x128xf32>
    %c0_2 = arith.constant 0 : index
    %c0_3 = arith.constant 0 : index
    %4 = vector.load %arg3[%c0_2, %c0_3] : memref<16x128xf32, #tpu.memory_space<vmem>>, vector<16x128xf32>
    %5 = math.absf %3 : vector<16x128xf32>
    %cst = arith.constant 0.000000e+00 : f32
    %6 = vector.broadcast %cst : f32 to vector<16x128xf32>
    %7 = arith.subf %6, %5 : vector<16x128xf32>
    %8 = math.exp %7 : vector<16x128xf32>
    %9 = math.log1p %8 : vector<16x128xf32>
    %cst_4 = arith.constant 0.000000e+00 : f32
    %10 = vector.broadcast %cst_4 : f32 to vector<16x128xf32>
    %11 = arith.maximumf %3, %10 : vector<16x128xf32>
    %12 = arith.mulf %3, %4 : vector<16x128xf32>
    %13 = arith.subf %11, %12 : vector<16x128xf32>
    %14 = arith.addf %13, %9 : vector<16x128xf32>
    %cst_5 = arith.constant 1.000000e+00 : f32
    %15 = vector.broadcast %cst_5 : f32 to vector<16x128xf32>
    %16 = arith.addf %15, %8 : vector<16x128xf32>
    %cst_6 = arith.constant 1.000000e+00 : f32
    %17 = vector.broadcast %cst_6 : f32 to vector<16x128xf32>
    %18 = arith.divf %17, %16 : vector<16x128xf32>
    %cst_7 = arith.constant 0.000000e+00 : f32
    %19 = vector.broadcast %cst_7 : f32 to vector<16x128xf32>
    %20 = arith.cmpf oge, %3, %19 : vector<16x128xf32>
    %21 = arith.mulf %8, %18 : vector<16x128xf32>
    %22 = arith.select %20, %18, %21 : vector<16x128xi1>, vector<16x128xf32>
    %23 = arith.addf %22, %4 : vector<16x128xf32>
    %24 = arith.mulf %22, %4 : vector<16x128xf32>
    %cst_8 = arith.constant 2.000000e+00 : f32
    %25 = vector.broadcast %cst_8 : f32 to vector<16x128xf32>
    %26 = arith.mulf %25, %24 : vector<16x128xf32>
    %27 = arith.subf %23, %26 : vector<16x128xf32>
    %28 = math.sqrt %27 : vector<16x128xf32>
    %cst_9 = arith.constant 6.000000e-01 : f32
    %29 = vector.broadcast %cst_9 : f32 to vector<16x128xf32>
    %30 = arith.mulf %29, %28 : vector<16x128xf32>
    %31 = arith.mulf %30, %14 : vector<16x128xf32>
    %cst_10 = arith.constant 0.000000e+00 : f32
    %32 = vector.broadcast %cst_10 : f32 to vector<16x128xf32>
    %33 = arith.cmpf ogt, %3, %32 : vector<16x128xf32>
    %34 = arith.extui %33 : vector<16x128xi1> to vector<16x128xi32>
    %35 = arith.sitofp %34 : vector<16x128xi32> to vector<16x128xf32>
    %36 = arith.mulf %35, %4 : vector<16x128xf32>
    %37 = arith.subf %35, %36 : vector<16x128xf32>
    %38 = arith.subf %4, %36 : vector<16x128xf32>
    %c0_11 = arith.constant 0 : index
    %c0_12 = arith.constant 0 : index
    %c0_13 = arith.constant 0 : index
    %39 = vector.load %arg4[%c0_11, %c0_12, %c0_13] : memref<4x8x128xf32, #tpu.memory_space<vmem>>, vector<1x8x128xf32>
    %40 = vector.shape_cast %39 : vector<1x8x128xf32> to vector<8x128xf32>
    %41 = vector.shape_cast %31 : vector<16x128xf32> to vector<2x8x128xf32>
    %cst_14 = arith.constant dense<0.000000e+00> : vector<8x128xf32>
    %42 = vector.multi_reduction <add>, %41, %cst_14 [0] : vector<2x8x128xf32> to vector<8x128xf32>
    %43 = arith.addf %40, %42 : vector<8x128xf32>
    %c0_15 = arith.constant 0 : index
    %c0_16 = arith.constant 0 : index
    %c0_17 = arith.constant 0 : index
    %44 = vector.load %arg4[%c0_15, %c0_16, %c0_17] : memref<4x8x128xf32, #tpu.memory_space<vmem>>, vector<1x8x128xf32>
    %45 = vector.shape_cast %44 : vector<1x8x128xf32> to vector<8x128xf32>
    %46 = vector.shape_cast %43 : vector<8x128xf32> to vector<1x8x128xf32>
    tpu.vector_store %arg4[%c0_15, %c0_16, %c0_17], %46 {strides = array<i32>} : memref<4x8x128xf32, #tpu.memory_space<vmem>>, vector<1x8x128xf32>,
    %c1 = arith.constant 1 : index
    %c0_18 = arith.constant 0 : index
    %c0_19 = arith.constant 0 : index
    %47 = vector.load %arg4[%c1, %c0_18, %c0_19] : memref<4x8x128xf32, #tpu.memory_space<vmem>>, vector<1x8x128xf32>
    %48 = vector.shape_cast %47 : vector<1x8x128xf32> to vector<8x128xf32>
    %49 = vector.shape_cast %36 : vector<16x128xf32> to vector<2x8x128xf32>
    %cst_20 = arith.constant dense<0.000000e+00> : vector<8x128xf32>
    %50 = vector.multi_reduction <add>, %49, %cst_20 [0] : vector<2x8x128xf32> to vector<8x128xf32>
    %51 = arith.addf %48, %50 : vector<8x128xf32>
    %c1_21 = arith.constant 1 : index
    %c0_22 = arith.constant 0 : index
    %c0_23 = arith.constant 0 : index
    %52 = vector.load %arg4[%c1_21, %c0_22, %c0_23] : memref<4x8x128xf32, #tpu.memory_space<vmem>>, vector<1x8x128xf32>
    %53 = vector.shape_cast %52 : vector<1x8x128xf32> to vector<8x128xf32>
    %54 = vector.shape_cast %51 : vector<8x128xf32> to vector<1x8x128xf32>
    tpu.vector_store %arg4[%c1_21, %c0_22, %c0_23], %54 {strides = array<i32>} : memref<4x8x128xf32, #tpu.memory_space<vmem>>, vector<1x8x128xf32>,
    %c2 = arith.constant 2 : index
    %c0_24 = arith.constant 0 : index
    %c0_25 = arith.constant 0 : index
    %55 = vector.load %arg4[%c2, %c0_24, %c0_25] : memref<4x8x128xf32, #tpu.memory_space<vmem>>, vector<1x8x128xf32>
    %56 = vector.shape_cast %55 : vector<1x8x128xf32> to vector<8x128xf32>
    %57 = vector.shape_cast %37 : vector<16x128xf32> to vector<2x8x128xf32>
    %cst_26 = arith.constant dense<0.000000e+00> : vector<8x128xf32>
    %58 = vector.multi_reduction <add>, %57, %cst_26 [0] : vector<2x8x128xf32> to vector<8x128xf32>
    %59 = arith.addf %56, %58 : vector<8x128xf32>
    %c2_27 = arith.constant 2 : index
    %c0_28 = arith.constant 0 : index
    %c0_29 = arith.constant 0 : index
    %60 = vector.load %arg4[%c2_27, %c0_28, %c0_29] : memref<4x8x128xf32, #tpu.memory_space<vmem>>, vector<1x8x128xf32>
    %61 = vector.shape_cast %60 : vector<1x8x128xf32> to vector<8x128xf32>
    %62 = vector.shape_cast %59 : vector<8x128xf32> to vector<1x8x128xf32>
    tpu.vector_store %arg4[%c2_27, %c0_28, %c0_29], %62 {strides = array<i32>} : memref<4x8x128xf32, #tpu.memory_space<vmem>>, vector<1x8x128xf32>,
    %c3 = arith.constant 3 : index
    %c0_30 = arith.constant 0 : index
    %c0_31 = arith.constant 0 : index
    %63 = vector.load %arg4[%c3, %c0_30, %c0_31] : memref<4x8x128xf32, #tpu.memory_space<vmem>>, vector<1x8x128xf32>
    %64 = vector.shape_cast %63 : vector<1x8x128xf32> to vector<8x128xf32>
    %65 = vector.shape_cast %38 : vector<16x128xf32> to vector<2x8x128xf32>
    %cst_32 = arith.constant dense<0.000000e+00> : vector<8x128xf32>
    %66 = vector.multi_reduction <add>, %65, %cst_32 [0] : vector<2x8x128xf32> to vector<8x128xf32>
    %67 = arith.addf %64, %66 : vector<8x128xf32>
    %c3_33 = arith.constant 3 : index
    %c0_34 = arith.constant 0 : index
    %c0_35 = arith.constant 0 : index
    %68 = vector.load %arg4[%c3_33, %c0_34, %c0_35] : memref<4x8x128xf32, #tpu.memory_space<vmem>>, vector<1x8x128xf32>
    %69 = vector.shape_cast %68 : vector<1x8x128xf32> to vector<8x128xf32>
    %70 = vector.shape_cast %67 : vector<8x128xf32> to vector<1x8x128xf32>
    tpu.vector_store %arg4[%c3_33, %c0_34, %c0_35], %70 {strides = array<i32>} : memref<4x8x128xf32, #tpu.memory_space<vmem>>, vector<1x8x128xf32>,
    return
  }
  func.func @transform_0(%arg0: i32, %arg1: i32) -> (i32, i32) {
    %c1_i32 = arith.constant 1 : i32
    %0 = arith.muli %arg0, %c1_i32 : i32
    %1 = arith.addi %0, %arg1 : i32
    %c0_i32 = arith.constant 0 : i32
    %c0_i32_0 = arith.constant 0 : i32
    return %1, %c0_i32 : i32, i32
  }
  func.func @transform_1(%arg0: i32, %arg1: i32) -> (i32, i32) {
    %c1_i32 = arith.constant 1 : i32
    %0 = arith.muli %arg0, %c1_i32 : i32
    %1 = arith.addi %0, %arg1 : i32
    %c0_i32 = arith.constant 0 : i32
    %c0_i32_0 = arith.constant 0 : i32
    return %1, %c0_i32 : i32, i32
  }
  func.func @transform_2(%arg0: i32, %arg1: i32) -> (i32, i32, i32) {
    %c0_i32 = arith.constant 0 : i32
    %c0_i32_0 = arith.constant 0 : i32
    %c0_i32_1 = arith.constant 0 : i32
    return %arg0, %c0_i32, %c0_i32_0 : i32, i32, i32
  }
}

</mosaic_0001>

<llo_original>
// kernel: tpu_custom_call.1
$region0: #{tpu_custom_call.1}
  #allocation0 [shape = 'u32[]', space=smem, size = 0x4, offset = 0x4, fixed_abs, tag = 'smem constant byte address 0x4 - core index']
  #allocation1 [shape = 'u32[144,128]{1,0:T(1,128)}', space=vmem, size = 0x12000, scoped, tag = 'internal scratch']
  %s0 = inlined_call_operand.hbm [shape: f32[16,128], index: 0, kind: input, shape index: {}]
  %s1 = inlined_call_operand.hbm [shape: f32[16,128], index: 1, kind: input, shape index: {}]
  %s2 = inlined_call_operand.hbm [shape: f32[4,8,128], index: 2, kind: output, shape index: {}]
  %s3 = sld [smem:[#allocation0]]
  $region30: #{tpu_custom_call.1} parent=0
    _
  %s5 = ssub.s32 1, %s3
  %s6 = scalar_select 0, %s5, %s3
  $region1: #{tpu_custom_call.1} parent=0
    #allocation2 [shape = 'u8[8192]{0}', space=vmem, size = 0x2000, scoped, tag = 'input window, operand 0, single buffered']
    #allocation3 [shape = 's32[1]{0}', space=sflag, size = 0x4, scoped, tag = 'scoped memory for tpu_custom_call.1']
    #allocation4 [shape = 's32[1]{0}', space=sflag, size = 0x4, scoped, tag = 'scoped memory for tpu_custom_call.1']
    #allocation5 [shape = 'u8[8192]{0}', space=vmem, size = 0x2000, scoped, tag = 'input window, operand 1, single buffered']
    #allocation6 [shape = 's32[1]{0}', space=sflag, size = 0x4, scoped, tag = 'scoped memory for tpu_custom_call.1']
    #allocation7 [shape = 'u8[16384]{0}', space=vmem, size = 0x4000, scoped, tag = 'output window, operand 0, single buffered']
    %7 = vsyncpa [#allocation3], 0
    %8 = vsyncpa [#allocation6], 0
    %9 = vsyncpa [#allocation4], 0
    // Predicated region
    $region2: #{tpu_custom_call.1} parent=1 // pred_check
      _
    $region3: #{tpu_custom_call.1} parent=1 // pred_check_branch
      %11 = sbr.rel (0) target = $region5
    $region4: #{tpu_custom_call.1} parent=1 // pred_region
      %s12 = sadd.s32 0, 0
      %s13 = smul.u32 2, %s12
      %s15 = ssub.s32 256, 256
      %16 = vsyncadd [#allocation3], %s15
      %s17 = smul.addr %s13, 128
      %s18 = scalar_lea.hbm %s0, %s17
      %s19 = sshll.u32 [#allocation2], 4
      %s20 = int_to_ptr.vmem [resolvable:$true] %s19
      %25 = dma.hbm_to_vmem [thread:$0]  %s18, 256, %s20, [#allocation3], 128, 128, 8
    $region5: #{tpu_custom_call.1} parent=1 // pred_fallthru
      _
    // Predicated region
    $region6: #{tpu_custom_call.1} parent=1 // pred_check
      _
    $region7: #{tpu_custom_call.1} parent=1 // pred_check_branch
      %27 = sbr.rel (0) target = $region9
    $region8: #{tpu_custom_call.1} parent=1 // pred_region
      %s28 = sadd.s32 0, 0
      %s29 = smul.u32 2, %s28
      %s31 = ssub.s32 256, 256
      %32 = vsyncadd [#allocation6], %s31
      %s33 = smul.addr %s29, 128
      %s34 = scalar_lea.hbm %s1, %s33
      %s35 = sshll.u32 [#allocation5], 4
      %s36 = int_to_ptr.vmem [resolvable:$true] %s35
      %41 = dma.hbm_to_vmem [thread:$0]  %s34, 256, %s36, [#allocation6], 128, 128, 8
    $region9: #{tpu_custom_call.1} parent=1 // pred_fallthru
      _
    // Predicated region
    $region10: #{tpu_custom_call.1} parent=1 // pred_check
      _
    $region11: #{tpu_custom_call.1} parent=1 // pred_check_branch
      %43 = sbr.rel (0) target = $region13
    $region12: #{tpu_custom_call.1} parent=1 // pred_region
      %44 = dma.done [#allocation3], 256
    $region13: #{tpu_custom_call.1} parent=1 // pred_fallthru
      _
    // Predicated region
    $region14: #{tpu_custom_call.1} parent=1 // pred_check
      _
    $region15: #{tpu_custom_call.1} parent=1 // pred_check_branch
      %46 = sbr.rel (0) target = $region17
    $region16: #{tpu_custom_call.1} parent=1 // pred_region
      %47 = dma.done [#allocation6], 256
    $region17: #{tpu_custom_call.1} parent=1 // pred_fallthru
      _
    %s48 = sadd.s32 0, 0
    %s49 = smul.u32 2, %s48
    %s50 = sadd.s32 0, 0
    %s51 = smul.u32 2, %s50
    %p52 = scmp.eq.s32.totalorder 0, 0
    // Predicated region
    $region18: #{tpu_custom_call.1} parent=1 // pred_check
      %p53 = pneg %p52
    $region19: #{tpu_custom_call.1} parent=1 // pred_check_branch
      %55 = sbr.rel (%p53) target = $region21
    $region20: #{tpu_custom_call.1} parent=1 // pred_region
      %56 = vst [vmem:[#allocation7] sm:$0xff] 0.0
      %57 = vst [vmem:[#allocation7 + $0x8] sm:$0xff] 0.0
      %58 = vst [vmem:[#allocation7 + $0x10] sm:$0xff] 0.0
      %59 = vst [vmem:[#allocation7 + $0x18] sm:$0xff] 0.0
    $region21: #{tpu_custom_call.1} parent=1 // pred_fallthru
      _
    %v60 = vld [vmem:[#allocation2] sm:$0xff]
    %v61 = vld [vmem:[#allocation2 + $0x8] sm:$0xff]
    %v62 = vld [vmem:[#allocation5] sm:$0xff]
    %v63 = vld [vmem:[#allocation5 + $0x8] sm:$0xff]
    %v64 = vand.u32 2147483647, %v60
    %v65 = vand.u32 2147483647, %v61
    %v66 = vsub.f32 0.0, %v64
    %v67 = vsub.f32 0.0, %v65
    %v68 = vmul.f32 %v66, 1.442695
    %v69 = vpow.pop %v68
    %v70 = vmul.f32 %v67, 1.442695
    %v71 = vpow.pop %v70
    %v72 = vadd.f32 %v69, 1.0
    %v73 = vlog2.pop %v72
    %v74 = vmul.f32 %v73, 0.6931472
    %v75 = vmul.f32 -0.5, %v69
    %v76 = vadd.f32 %v75, 1.0
    %v77 = vmul.f32 %v76, %v69
    %v78 = vand.u32 2147483647, %v69
    %vm79 = vcmp.lt.f32.partialorder %v78, 0.0004427343
    %v80 = vsel %vm79, %v77, %v74
    %v81 = vadd.f32 %v71, 1.0
    %v82 = vlog2.pop %v81
    %v83 = vmul.f32 %v82, 0.6931472
    %v84 = vmul.f32 -0.5, %v71
    %v85 = vadd.f32 %v84, 1.0
    %v86 = vmul.f32 %v85, %v71
    %v87 = vand.u32 2147483647, %v71
    %vm88 = vcmp.lt.f32.partialorder %v87, 0.0004427343
    %v89 = vsel %vm88, %v86, %v83
    %v90 = vmax.f32 %v60, 0.0
    %v91 = vmax.f32 %v61, 0.0
    %v92 = vmul.f32 %v60, %v62
    %v93 = vmul.f32 %v61, %v63
    %v94 = vsub.f32 %v90, %v92
    %v95 = vsub.f32 %v91, %v93
    %v96 = vadd.f32 %v94, %v80
    %v97 = vadd.f32 %v95, %v89
    %v98 = vadd.f32 %v69, 1.0
    %v99 = vadd.f32 %v71, 1.0
    %v100 = vrcp.pop %v98
    %v101 = vmul.f32 1.0, %v100
    %v102 = vrcp.pop %v99
    %v103 = vmul.f32 1.0, %v102
    %vm104 = vcmp.ge.f32.partialorder %v60, 0.0
    %vm105 = vcmp.ge.f32.partialorder %v61, 0.0
    %v106 = vmul.f32 %v69, %v101
    %v107 = vmul.f32 %v71, %v103
    %v108 = vsel %vm104, %v101, %v106
    %v109 = vsel %vm105, %v103, %v107
    %v110 = vadd.f32 %v108, %v62
    %v111 = vadd.f32 %v109, %v63
    %v112 = vmul.f32 %v108, %v62
    %v113 = vmul.f32 %v109, %v63
    %v114 = vmul.f32 %v112, 2.0
    %v115 = vmul.f32 %v113, 2.0
    %v116 = vsub.f32 %v110, %v114
    %v117 = vsub.f32 %v111, %v115
    %v118 = vrsqrt.pop %v116
    %v119 = vmul.f32 %v116, %v118
    %vm120 = vcmp.eq.f32.partialorder %v116, inf
    %v121 = vsel %vm120, %v116, %v119
    %vm122 = vcmp.eq.f32.partialorder %v116, 0.0
    %v123 = vand.u32 %v116, 2147483648
    %v124 = vsel %vm122, %v123, %v121
    %v125 = vrsqrt.pop %v117
    %v126 = vmul.f32 %v117, %v125
    %vm127 = vcmp.eq.f32.partialorder %v117, inf
    %v128 = vsel %vm127, %v117, %v126
    %vm129 = vcmp.eq.f32.partialorder %v117, 0.0
    %v130 = vand.u32 %v117, 2147483648
    %v131 = vsel %vm129, %v130, %v128
    %v132 = vmul.f32 %v124, 0.6
    %v133 = vmul.f32 %v131, 0.6
    %v134 = vmul.f32 %v132, %v96
    %v135 = vmul.f32 %v133, %v97
    %vm136 = vcmp.gt.f32.partialorder %v60, 0.0
    %vm137 = vcmp.gt.f32.partialorder %v61, 0.0
    %v138 = vsel %vm136, 1, 0
    %v139 = vsel %vm137, 1, 0
    %v140 = vcvt.s32.f32 %v138
    %v141 = vcvt.s32.f32 %v139
    %v142 = vmul.f32 %v140, %v62
    %v143 = vmul.f32 %v141, %v63
    %v144 = vsub.f32 %v140, %v142
    %v145 = vsub.f32 %v141, %v143
    %v146 = vsub.f32 %v62, %v142
    %v147 = vsub.f32 %v63, %v143
    %v148 = vld [vmem:[#allocation7] sm:$0xff]
    %v149 = vadd.f32 %v134, %v135
    %v150 = vadd.f32 %v148, %v149
    %151 = vst [vmem:[#allocation7] sm:$0xff] %v150
    %s152 = scalar_lea.vmem [#allocation7], 8
    %v153 = vld [vmem:[%s152] sm:$0xff]
    %v154 = vadd.f32 %v142, %v143
    %v155 = vadd.f32 %v153, %v154
    %156 = vst [vmem:[%s152] sm:$0xff] %v155
    %s157 = scalar_lea.vmem [#allocation7], 16
    %v158 = vld [vmem:[%s157] sm:$0xff]
    %v159 = vadd.f32 %v144, %v145
    %v160 = vadd.f32 %v158, %v159
    %161 = vst [vmem:[%s157] sm:$0xff] %v160
    %s162 = scalar_lea.vmem [#allocation7], 24
    %v163 = vld [vmem:[%s162] sm:$0xff]
    %v164 = vadd.f32 %v146, %v147
    %v165 = vadd.f32 %v163, %v164
    %166 = vst [vmem:[%s162] sm:$0xff] %v165
    // Predicated region
    $region22: #{tpu_custom_call.1} parent=1 // pred_check
      _
    $region23: #{tpu_custom_call.1} parent=1 // pred_check_branch
      %168 = sbr.rel (0) target = $region25
    $region24: #{tpu_custom_call.1} parent=1 // pred_region
      %s170 = ssub.s32 512, 512
      %171 = vsyncadd [#allocation4], %s170
      %s172 = sshll.u32 [#allocation7], 4
      %s173 = int_to_ptr.vmem [resolvable:$true] %s172
      %178 = dma.vmem_to_hbm [thread:$0]  %s173, 512, %s2, [#allocation4], 128, 128, 8
    $region25: #{tpu_custom_call.1} parent=1 // pred_fallthru
      _
    // Predicated region
    $region26: #{tpu_custom_call.1} parent=1 // pred_check
      _
    $region27: #{tpu_custom_call.1} parent=1 // pred_check_branch
      %180 = sbr.rel (0) target = $region29
    $region28: #{tpu_custom_call.1} parent=1 // pred_region
      %181 = dma.done [#allocation4], 512
    $region29: #{tpu_custom_call.1} parent=1 // pred_fallthru
      _
    %182 = vsyncpa [#allocation3], 1
    %183 = vsyncpa [#allocation6], 1
    %184 = vsyncpa [#allocation4], 1

</llo_original>
